<compile_context>
chip_gen: v7x
topology: tpu7x:2x2x1
jax: 0.10.0
libtpu: 0.0.40
codegen_flags: <defaults>
</compile_context>

<pallas_src>
import functools

import jax
import jax.numpy as jnp
from jax import lax
from jax.experimental import pallas as pl
from jax.experimental.pallas import tpu as pltpu


_SQRT_2_OVER_PI = 0.7978845608028654


def _new_gelu(h):
    """GPT-2 'gelu_new' on an f32 array (VPU muls/adds, tanh on the EUP)."""
    # inner = sqrt(2/pi) * (h + 0.044715*h^3), rewritten to save one multiply.
    inner = _SQRT_2_OVER_PI * h * (1.0 + 0.044715 * (h * h))
    return 0.5 * h * (1.0 + jnp.tanh(inner))


def _round_up(x, m):
    return ((x + m - 1) // m) * m


def _single_buffered(block_shape, index_map):
    """BlockSpec for grid-constant operands: fetched once, no 2x double-buffer."""
    if hasattr(pl, "Buffered"):
        try:
            return pl.BlockSpec(block_shape, index_map,
                                pipeline_mode=pl.Buffered(1))
        except TypeError:  # older jax without pipeline_mode kwarg
            pass
    return pl.BlockSpec(block_shape, index_map)


def _vmem_limit_bytes():
    """~75% of physical VMEM (96 MiB on v5e/v6e, 48 MiB on v7x)."""
    cap = 64 * 1024 * 1024
    try:
        cap = int(pltpu.get_tpu_info().vmem_capacity_bytes)
    except Exception:
        pass
    return (cap * 3) // 4


# ----------------------------------------------------------------------------
# Kernels
# ----------------------------------------------------------------------------
def _mlp_resident_kernel(x_ref, wfc_ref, bfc_ref, wproj_ref, bproj_ref, o_ref,
                         *, i_chunk, n_chunks):
    # x_ref: (tm, H); wfc_ref: (H, I); bfc_ref: (1, I);
    # wproj_ref: (I, tn); bproj_ref: (1, tn); o_ref: (tm, tn).
    x = x_ref[...]

    def one_chunk(wfc_blk, bfc_blk, wproj_blk):
        h = jnp.dot(x, wfc_blk, preferred_element_type=jnp.float32)
        h = h + bfc_blk.astype(jnp.float32)
        h = _new_gelu(h)
        return jnp.dot(h.astype(wproj_blk.dtype), wproj_blk,
                       preferred_element_type=jnp.float32)

    if n_chunks == 1:
        acc = one_chunk(wfc_ref[...], bfc_ref[...], wproj_ref[...])
    else:
        def body(k, acc):
            start = pl.multiple_of(k * i_chunk, i_chunk)
            return acc + one_chunk(wfc_ref[:, pl.ds(start, i_chunk)],
                                   bfc_ref[:, pl.ds(start, i_chunk)],
                                   wproj_ref[pl.ds(start, i_chunk), :])

        acc = lax.fori_loop(0, n_chunks, body,
                            jnp.zeros(o_ref.shape, jnp.float32),
                            unroll=True if n_chunks <= 8 else 2)

    o_ref[...] = (acc + bproj_ref[...].astype(jnp.float32)).astype(o_ref.dtype)
    # TODO(synk): GPT2MLP's resid dropout is identity in eval mode; not modeled.


def _mlp_streaming_kernel(x_ref, wfc_ref, bfc_ref, wproj_ref, bproj_ref, o_ref,
                          acc_ref):
    # grid = (M tiles, I chunks). x_ref: (tm, H); wfc_ref: (H, tI);
    # bfc_ref: (1, tI); wproj_ref: (tI, H); bproj_ref: (1, H);
    # o_ref / acc_ref: (tm, H).
    k = pl.program_id(1)

    @pl.when(k == 0)
    def _():
        acc_ref[...] = jnp.zeros_like(acc_ref)

    h = jnp.dot(x_ref[...], wfc_ref[...], preferred_element_type=jnp.float32)
    h = h + bfc_ref[...].astype(jnp.float32)
    h = _new_gelu(h)
    acc_ref[...] += jnp.dot(h.astype(wproj_ref.dtype), wproj_ref[...],
                            preferred_element_type=jnp.float32)

    @pl.when(k == pl.num_programs(1) - 1)
    def _():
        o_ref[...] = (acc_ref[...]
                      + bproj_ref[...].astype(jnp.float32)).astype(o_ref.dtype)


# ----------------------------------------------------------------------------
# Wrapper
# ----------------------------------------------------------------------------
def gpt2_mlp_forward(x, w_fc, b_fc, w_proj, b_proj, *, tm=None, i_chunk=512,
                     compute_dtype=None, force_stream=False):
    """Fused GPT2MLP forward.

    x: [B, S, H]; w_fc: [H, I]; b_fc: [I]; w_proj: [I, H]; b_proj: [H].
    compute_dtype: optional low-precision dtype (e.g. jnp.bfloat16) fed to the
      MXU; accumulation/GELU stay in f32 and the output keeps x.dtype.
    """
    B, S, H = x.shape
    I = w_fc.shape[1]
    M = B * S
    out_dtype = x.dtype

    x2d = x.reshape(M, H)
    b_fc2d = b_fc.reshape(1, I)
    b_proj2d = b_proj.reshape(1, H)

    if compute_dtype is not None:
        x2d = x2d.astype(compute_dtype)
        w_fc = w_fc.astype(compute_dtype)
        b_fc2d = b_fc2d.astype(compute_dtype)
        w_proj = w_proj.astype(compute_dtype)
        b_proj2d = b_proj2d.astype(compute_dtype)

    # ---- M tile -------------------------------------------------------------
    if tm is None:
        tm = 512  # multiple of the 256x256 MXU; amortizes per-step overhead
    tm = _round_up(max(8, min(tm, _round_up(M, 8))), 8)
    num_m = pl.cdiv(M, tm)
    M_pad = num_m * tm
    if M_pad != M:
        x2d = jnp.pad(x2d, ((0, M_pad - M), (0, 0)))

    # ---- intermediate chunk: multiple of 128 that divides I ------------------
    ic = min(i_chunk, I)
    if I % 128 == 0:
        ic = max(128, (ic // 128) * 128)
        while I % ic != 0:
            ic -= 128
    else:
        ic = I  # no clean chunking possible
    n_chunks = I // ic

    # ---- VMEM budget & path selection ----------------------------------------
    vmem_limit = _vmem_limit_bytes()
    w_isz = w_fc.dtype.itemsize
    x_isz = x2d.dtype.itemsize
    o_isz = jnp.dtype(out_dtype).itemsize
    resident_bytes = (
        2 * H * I * w_isz                     # W_fc + W_proj, single-buffered
        + (I + H) * w_isz                     # biases
        + 2 * tm * H * (x_isz + o_isz)        # double-buffered x / out tiles
        + tm * ic * (4 + w_isz)               # live f32 chunk + its cast copy
        + 2 * tm * H * 4                      # f32 accumulator / out temps
    )
    use_stream = force_stream or resident_bytes > int(0.9 * vmem_limit)

    weight_bytes = (2 * H * I + I + H) * w_isz
    cost = pl.CostEstimate(
        flops=4 * M_pad * H * I,              # two matmuls, 2*M*H*I each
        transcendentals=M_pad * I,            # one tanh per GELU element
        bytes_accessed=(M_pad * H * (x_isz + o_isz)
                        + weight_bytes * (num_m if use_stream else 1)),
    )

    if not use_stream:
        # Split output H across a 2nd parallel axis only when a single M tile
        # would otherwise leave the 2nd TensorCore idle (v7x megacore).
        num_n = 2 if (num_m == 1 and H % 256 == 0) else 1
        tn = H // num_n
        wproj_spec = _single_buffered if num_n == 1 else pl.BlockSpec

        grid_spec = pltpu.PrefetchScalarGridSpec(
            num_scalar_prefetch=0,
            grid=(num_m, num_n),
            in_specs=[
                pl.BlockSpec((tm, H), lambda i, j: (i, 0)),      # x (pipelined)
                _single_buffered((H, I), lambda i, j: (0, 0)),   # W_fc resident
                _single_buffered((1, I), lambda i, j: (0, 0)),   # b_fc resident
                wproj_spec((I, tn), lambda i, j: (0, j)),        # W_proj
                wproj_spec((1, tn), lambda i, j: (0, j)),        # b_proj
            ],
            out_specs=pl.BlockSpec((tm, tn), lambda i, j: (i, j)),
        )
        kernel = functools.partial(_mlp_resident_kernel,
                                   i_chunk=ic, n_chunks=n_chunks)
        dim_sem = ("parallel", "parallel")
    else:
        num_k = n_chunks
        grid_spec = pltpu.PrefetchScalarGridSpec(
            num_scalar_prefetch=0,
            grid=(num_m, num_k),
            in_specs=[
                pl.BlockSpec((tm, H), lambda i, k: (i, 0)),      # x
                pl.BlockSpec((H, ic), lambda i, k: (0, k)),      # W_fc chunk
                pl.BlockSpec((1, ic), lambda i, k: (0, k)),      # b_fc chunk
                pl.BlockSpec((ic, H), lambda i, k: (k, 0)),      # W_proj chunk
                _single_buffered((1, H), lambda i, k: (0, 0)),   # b_proj
            ],
            out_specs=pl.BlockSpec((tm, H), lambda i, k: (i, 0)),
            scratch_shapes=[pltpu.VMEM((tm, H), jnp.float32)],
        )
        kernel = _mlp_streaming_kernel
        dim_sem = ("parallel", "arbitrary")

    out2d = pl.pallas_call(
        kernel,
        out_shape=jax.ShapeDtypeStruct((M_pad, H), out_dtype),
        grid_spec=grid_spec,
        compiler_params=pltpu.CompilerParams(
            dimension_semantics=dim_sem,
            vmem_limit_bytes=vmem_limit,
        ),
        cost_estimate=cost,
    )(x2d, w_fc, b_fc2d, w_proj, b_proj2d)

    if M_pad != M:
        out2d = out2d[:M]  # padded rows compute gelu(b_fc)@W_proj+b_proj; drop
    return out2d.reshape(B, S, H)


def _reference(x, w_fc, b_fc, w_proj, b_proj):
    h = jnp.dot(x, w_fc) + b_fc
    h = 0.5 * h * (1.0 + jnp.tanh(_SQRT_2_OVER_PI * (h + 0.044715 * h ** 3)))
    return jnp.dot(h, w_proj) + b_proj


if __name__ == "__main__":
    key = jax.random.PRNGKey(0)

    def make_inputs(k, B, S, H, I):
        kx, kwf, kbf, kwp, kbp = jax.random.split(k, 5)
        x = jax.random.normal(kx, (B, S, H), dtype=jnp.float32)
        w_fc = jax.random.normal(kwf, (H, I), dtype=jnp.float32) * 0.02
        b_fc = jax.random.normal(kbf, (I,), dtype=jnp.float32) * 0.02
        w_proj = jax.random.normal(kwp, (I, H), dtype=jnp.float32) * 0.02
        b_proj = jax.random.normal(kbp, (H,), dtype=jnp.float32) * 0.02
        return x, w_fc, b_fc, w_proj, b_proj

    k1, k2 = jax.random.split(key)

    # 1) Resident path, f32, GPT-2-like small shapes (I = 4*H).
    args1 = make_inputs(k1, 2, 8, 32, 128)
    out = jax.block_until_ready(gpt2_mlp_forward(*args1))
    ref = _reference(*args1)
    assert out.shape == (2, 8, 32)
    assert jnp.allclose(out, ref, atol=1e-5, rtol=1e-5)

    # 2) Resident path exercising the multi-chunk intermediate loop.
    args2 = make_inputs(k2, 2, 8, 64, 256)
    out2 = jax.block_until_ready(gpt2_mlp_forward(*args2, i_chunk=128))
    ref2 = _reference(*args2)
    assert jnp.allclose(out2, ref2, atol=2e-5, rtol=2e-5)

    # 3) Streaming (weight-blocked) fallback with accumulation across I chunks.
    out3 = jax.block_until_ready(
        gpt2_mlp_forward(*args2, i_chunk=128, force_stream=True))
    assert jnp.allclose(out3, ref2, atol=2e-5, rtol=2e-5)

    # 4) bf16 MXU feeds (production dtype), f32 accumulation; loose tolerance.
    out4 = jax.block_until_ready(
        gpt2_mlp_forward(*args1, compute_dtype=jnp.bfloat16))
    assert jnp.allclose(out4, ref, atol=5e-2, rtol=5e-2)

    print("KERNEL_OK")
</pallas_src>

<mosaic_0001>
module attributes {stable_mosaic.version = 11 : i64} {
  func.func @_mlp_resident_kernel(%arg0: i32, %arg1: i32, %arg2: memref<16x32xf32, #tpu.memory_space<vmem>>, %arg3: memref<32x128xf32, #tpu.memory_space<vmem>>, %arg4: memref<1x128xf32, #tpu.memory_space<vmem>>, %arg5: memref<128x32xf32, #tpu.memory_space<vmem>>, %arg6: memref<1x32xf32, #tpu.memory_space<vmem>>, %arg7: memref<16x32xf32, #tpu.memory_space<vmem>>) attributes {dimension_semantics = [#tpu.dimension_semantics<parallel>, #tpu.dimension_semantics<parallel>], iteration_bounds = array<i64: 1, 1>, scalar_prefetch = 0 : i64, scratch_operands = 0 : i64, tpu.core_type = #tpu.core_type<tc>, window_params = [{transform_indices = @transform_0, window_bounds = array<i64: 16, 32>}, {pipeline_mode = #tpu.pipeline_mode<synchronous>, transform_indices = @transform_1, window_bounds = array<i64: 32, 128>}, {pipeline_mode = #tpu.pipeline_mode<synchronous>, transform_indices = @transform_2, window_bounds = array<i64: 1, 128>}, {pipeline_mode = #tpu.pipeline_mode<synchronous>, transform_indices = @transform_3, window_bounds = array<i64: 128, 32>}, {pipeline_mode = #tpu.pipeline_mode<synchronous>, transform_indices = @transform_4, window_bounds = array<i64: 1, 32>}, {transform_indices = @transform_5, window_bounds = array<i64: 16, 32>}]} {
    %c0 = arith.constant 0 : index
    %c0_0 = arith.constant 0 : index
    %0 = vector.load %arg2[%c0, %c0_0] : memref<16x32xf32, #tpu.memory_space<vmem>>, vector<16x32xf32>
    %c0_1 = arith.constant 0 : index
    %c0_2 = arith.constant 0 : index
    %1 = vector.load %arg3[%c0_1, %c0_2] : memref<32x128xf32, #tpu.memory_space<vmem>>, vector<32x128xf32>
    %c0_3 = arith.constant 0 : index
    %c0_4 = arith.constant 0 : index
    %2 = vector.load %arg4[%c0_3, %c0_4] : memref<1x128xf32, #tpu.memory_space<vmem>>, vector<1x128xf32>
    %c0_5 = arith.constant 0 : index
    %c0_6 = arith.constant 0 : index
    %3 = vector.load %arg5[%c0_5, %c0_6] : memref<128x32xf32, #tpu.memory_space<vmem>>, vector<128x32xf32>
    %cst = arith.constant dense<0.000000e+00> : vector<16x128xf32>
    %4 = tpu.matmul %0, %1, %cst {dimension_numbers = #tpu.dot_dimension_numbers<[1], [0], [0], [1], [0, 0, 1, 1], [], []>} : vector<16x32xf32>, vector<32x128xf32>, vector<16x128xf32> -> vector<16x128xf32>
    %5 = vector.broadcast %2 : vector<1x128xf32> to vector<16x128xf32>
    %6 = arith.addf %4, %5 : vector<16x128xf32>
    %cst_7 = arith.constant 0.797884583 : f32
    %7 = vector.broadcast %cst_7 : f32 to vector<16x128xf32>
    %8 = arith.mulf %7, %6 : vector<16x128xf32>
    %9 = arith.mulf %6, %6 : vector<16x128xf32>
    %cst_8 = arith.constant 4.471500e-02 : f32
    %10 = vector.broadcast %cst_8 : f32 to vector<16x128xf32>
    %11 = arith.mulf %10, %9 : vector<16x128xf32>
    %cst_9 = arith.constant 1.000000e+00 : f32
    %12 = vector.broadcast %cst_9 : f32 to vector<16x128xf32>
    %13 = arith.addf %12, %11 : vector<16x128xf32>
    %14 = arith.mulf %8, %13 : vector<16x128xf32>
    %cst_10 = arith.constant 5.000000e-01 : f32
    %15 = vector.broadcast %cst_10 : f32 to vector<16x128xf32>
    %16 = arith.mulf %15, %6 : vector<16x128xf32>
    %17 = math.tanh %14 : vector<16x128xf32>
    %cst_11 = arith.constant 1.000000e+00 : f32
    %18 = vector.broadcast %cst_11 : f32 to vector<16x128xf32>
    %19 = arith.addf %18, %17 : vector<16x128xf32>
    %20 = arith.mulf %16, %19 : vector<16x128xf32>
    %cst_12 = arith.constant dense<0.000000e+00> : vector<16x32xf32>
    %21 = tpu.matmul %20, %3, %cst_12 {dimension_numbers = #tpu.dot_dimension_numbers<[1], [0], [0], [1], [0, 0, 1, 1], [], []>} : vector<16x128xf32>, vector<128x32xf32>, vector<16x32xf32> -> vector<16x32xf32>
    %c0_13 = arith.constant 0 : index
    %c0_14 = arith.constant 0 : index
    %22 = vector.load %arg6[%c0_13, %c0_14] : memref<1x32xf32, #tpu.memory_space<vmem>>, vector<1x32xf32>
    %23 = vector.broadcast %22 : vector<1x32xf32> to vector<16x32xf32>
    %24 = arith.addf %21, %23 : vector<16x32xf32>
    %c0_15 = arith.constant 0 : index
    %c0_16 = arith.constant 0 : index
    %25 = vector.load %arg7[%c0_15, %c0_16] : memref<16x32xf32, #tpu.memory_space<vmem>>, vector<16x32xf32>
    tpu.vector_store %arg7[%c0_15, %c0_16], %24 {strides = array<i32>} : memref<16x32xf32, #tpu.memory_space<vmem>>, vector<16x32xf32>,
    return
  }
  func.func @transform_0(%arg0: i32, %arg1: i32) -> (i32, i32) {
    %c0_i32 = arith.constant 0 : i32
    %c0_i32_0 = arith.constant 0 : i32
    return %arg0, %c0_i32 : i32, i32
  }
  func.func @transform_1(%arg0: i32, %arg1: i32) -> (i32, i32) {
    %c0_i32 = arith.constant 0 : i32
    %c0_i32_0 = arith.constant 0 : i32
    %c0_i32_1 = arith.constant 0 : i32
    return %c0_i32, %c0_i32_0 : i32, i32
  }
  func.func @transform_2(%arg0: i32, %arg1: i32) -> (i32, i32) {
    %c0_i32 = arith.constant 0 : i32
    %c0_i32_0 = arith.constant 0 : i32
    %c0_i32_1 = arith.constant 0 : i32
    return %c0_i32, %c0_i32_0 : i32, i32
  }
  func.func @transform_3(%arg0: i32, %arg1: i32) -> (i32, i32) {
    %c0_i32 = arith.constant 0 : i32
    %c0_i32_0 = arith.constant 0 : i32
    return %c0_i32, %arg1 : i32, i32
  }
  func.func @transform_4(%arg0: i32, %arg1: i32) -> (i32, i32) {
    %c0_i32 = arith.constant 0 : i32
    %c0_i32_0 = arith.constant 0 : i32
    return %c0_i32, %arg1 : i32, i32
  }
  func.func @transform_5(%arg0: i32, %arg1: i32) -> (i32, i32) {
    %c0_i32 = arith.constant 0 : i32
    return %arg0, %arg1 : i32, i32
  }
}

</mosaic_0001>

<llo_original>
// kernel: tpu_custom_call.1
$region0: #{tpu_custom_call.1}
  #allocation0 [shape = 'u32[]', space=smem, size = 0x4, offset = 0x4, fixed_abs, tag = 'smem constant byte address 0x4 - core index']
  #allocation1 [shape = 'u32[144,128]{1,0:T(1,128)}', space=vmem, size = 0x12000, scoped, tag = 'internal scratch']
  %s0 = inlined_call_operand.vmem [shape: f32[16,32], index: 0, kind: input, shape index: {}]
  %s1 = inlined_call_operand.vmem [shape: f32[32,128], index: 1, kind: input, shape index: {}]
  %s2 = inlined_call_operand.vmem [shape: f32[1,128], index: 2, kind: input, shape index: {}]
  %s3 = inlined_call_operand.vmem [shape: f32[128,32], index: 3, kind: input, shape index: {}]
  %s4 = inlined_call_operand.vmem [shape: f32[1,32], index: 4, kind: input, shape index: {}]
  %s5 = inlined_call_operand.hbm [shape: f32[16,32], index: 5, kind: output, shape index: {}]
  %s6 = sld [smem:[#allocation0]]
  $region30: #{tpu_custom_call.1} parent=0
    _
  %s8 = ssub.s32 1, %s6
  %s9 = scalar_select 0, %s8, %s6
  $region1: #{tpu_custom_call.1} parent=0
    #allocation2 [shape = 'u8[8192]{0}', space=vmem, size = 0x2000, scoped, tag = 'output window, operand 0, single buffered']
    #allocation3 [shape = 's32[1]{0}', space=sflag, size = 0x4, scoped, tag = 'scoped memory for tpu_custom_call.1']
    %10 = vsyncpa [#allocation3], 0
    // Predicated region
    $region2: #{tpu_custom_call.1} parent=1 // pred_check
      _
    $region3: #{tpu_custom_call.1} parent=1 // pred_check_branch
      %12 = sbr.rel (0) target = $region5
    $region4: #{tpu_custom_call.1} parent=1 // pred_region
      _
    $region5: #{tpu_custom_call.1} parent=1 // pred_fallthru
      _
    // Predicated region
    $region6: #{tpu_custom_call.1} parent=1 // pred_check
      _
    $region7: #{tpu_custom_call.1} parent=1 // pred_check_branch
      %14 = sbr.rel (0) target = $region9
    $region8: #{tpu_custom_call.1} parent=1 // pred_region
      _
    $region9: #{tpu_custom_call.1} parent=1 // pred_fallthru
      _
    // Predicated region
    $region10: #{tpu_custom_call.1} parent=1 // pred_check
      _
    $region11: #{tpu_custom_call.1} parent=1 // pred_check_branch
      %16 = sbr.rel (0) target = $region13
    $region12: #{tpu_custom_call.1} parent=1 // pred_region
      _
    $region13: #{tpu_custom_call.1} parent=1 // pred_fallthru
      _
    // Predicated region
    $region14: #{tpu_custom_call.1} parent=1 // pred_check
      _
    $region15: #{tpu_custom_call.1} parent=1 // pred_check_branch
      %18 = sbr.rel (0) target = $region17
    $region16: #{tpu_custom_call.1} parent=1 // pred_region
      _
    $region17: #{tpu_custom_call.1} parent=1 // pred_fallthru
      _
    // Predicated region
    $region18: #{tpu_custom_call.1} parent=1 // pred_check
      _
    $region19: #{tpu_custom_call.1} parent=1 // pred_check_branch
      %20 = sbr.rel (0) target = $region21
    $region20: #{tpu_custom_call.1} parent=1 // pred_region
      _
    $region21: #{tpu_custom_call.1} parent=1 // pred_fallthru
      _
    %v21 = vld [vmem:[%s0] sm:$0xff]
    %v22 = vld [vmem:[%s0 + $0x8] sm:$0xff]
    %v23 = vld [vmem:[%s1] sm:$0xff]
    %v24 = vld [vmem:[%s1 + $0x8] sm:$0xff]
    %v25 = vld [vmem:[%s1 + $0x10] sm:$0xff]
    %v26 = vld [vmem:[%s1 + $0x18] sm:$0xff]
    %v27 = vld [vmem:[%s2] sm:$0x1]
    %v28 = vld [vmem:[%s3] sm:$0xff]
    %v29 = vld [vmem:[%s3 + $0x8] sm:$0xff]
    %v30 = vld [vmem:[%s3 + $0x10] sm:$0xff]
    %v31 = vld [vmem:[%s3 + $0x18] sm:$0xff]
    %v32 = vld [vmem:[%s3 + $0x20] sm:$0xff]
    %v33 = vld [vmem:[%s3 + $0x28] sm:$0xff]
    %v34 = vld [vmem:[%s3 + $0x30] sm:$0xff]
    %v35 = vld [vmem:[%s3 + $0x38] sm:$0xff]
    %v36 = vld [vmem:[%s3 + $0x40] sm:$0xff]
    %v37 = vld [vmem:[%s3 + $0x48] sm:$0xff]
    %v38 = vld [vmem:[%s3 + $0x50] sm:$0xff]
    %v39 = vld [vmem:[%s3 + $0x58] sm:$0xff]
    %v40 = vld [vmem:[%s3 + $0x60] sm:$0xff]
    %v41 = vld [vmem:[%s3 + $0x68] sm:$0xff]
    %v42 = vld [vmem:[%s3 + $0x70] sm:$0xff]
    %v43 = vld [vmem:[%s3 + $0x78] sm:$0xff]
    %v45 = vlaneseq
    %v46 = vshrl.u32 %v45, 7
    %v47 = vsub.s32 0, %v46
    %v48 = vrot.slane %v27, %v47
    %vm50 = vcmask 261120
    %v52 = vsel %vm50, %v21, 0
    %v55 = vsel %vm50, %v22, 0
    %57 = vmatprep.subr.mxu0 0.0
    %58 = vmatpush1.msra.mxu0 %v23
    %59 = vmatprep.subr.mxu0 0.0
    %60 = vmatpush1.msra.mxu0 %v24
    %61 = vmatprep.subr.mxu0 0.0
    %62 = vmatpush1.msra.mxu0 %v25
    %63 = vmatprep.subr.mxu0 0.0
    %64 = vmatpush1.msra.mxu0 %v26
    %65 = vmatprep.subr.mxu0 0.0
    %66 = vmatpush1.msra.mxu0 0.0
    %67 = vmatprep.subr.mxu0 0.0
    %68 = vmatpush1.msra.mxu0 0.0
    %69 = vmatprep.subr.mxu0 0.0
    %70 = vmatpush1.msra.mxu0 0.0
    %71 = vmatprep.subr.mxu0 0.0
    %72 = vmatpush1.msra.mxu0 0.0
    %73 = vmatprep.subr.mxu0 0.0
    %74 = vmatpush1.msra.mxu0 0.0
    %75 = vmatprep.subr.mxu0 0.0
    %76 = vmatpush1.msra.mxu0 0.0
    %77 = vmatprep.subr.mxu0 0.0
    %78 = vmatpush1.msra.mxu0 0.0
    %79 = vmatprep.subr.mxu0 0.0
    %80 = vmatpush1.msra.mxu0 0.0
    %81 = vmatprep.subr.mxu0 0.0
    %82 = vmatpush1.msra.mxu0 0.0
    %83 = vmatprep.subr.mxu0 0.0
    %84 = vmatpush1.msra.mxu0 0.0
    %85 = vmatprep.subr.mxu0 0.0
    %86 = vmatpush1.msra.mxu0 0.0
    %87 = vmatprep.subr.mxu0 0.0
    %88 = vmatpush1.msra.mxu0 0.0
    %89 = vmatprep.subr.mxu0 0.0
    %90 = vmatpush1.msra.mxu0 0.0
    %91 = vmatprep.subr.mxu0 0.0
    %92 = vmatpush1.msra.mxu0 0.0
    %93 = vmatprep.subr.mxu0 0.0
    %94 = vmatpush1.msra.mxu0 0.0
    %95 = vmatprep.subr.mxu0 0.0
    %96 = vmatpush1.msra.mxu0 0.0
    %97 = vmatprep.subr.mxu0 0.0
    %98 = vmatpush1.msra.mxu0 0.0
    %99 = vmatprep.subr.mxu0 0.0
    %100 = vmatpush1.msra.mxu0 0.0
    %101 = vmatprep.subr.mxu0 0.0
    %102 = vmatpush1.msra.mxu0 0.0
    %103 = vmatprep.subr.mxu0 0.0
    %104 = vmatpush1.msra.mxu0 0.0
    %105 = vmatprep.subr.mxu0 0.0
    %106 = vmatpush1.msra.mxu0 0.0
    %107 = vmatprep.subr.mxu0 0.0
    %108 = vmatpush1.msra.mxu0 0.0
    %109 = vmatprep.subr.mxu0 0.0
    %110 = vmatpush1.msra.mxu0 0.0
    %111 = vmatprep.subr.mxu0 0.0
    %112 = vmatpush1.msra.mxu0 0.0
    %113 = vmatprep.subr.mxu0 0.0
    %114 = vmatpush1.msra.mxu0 0.0
    %115 = vmatprep.subr.mxu0 0.0
    %116 = vmatpush1.msra.mxu0 0.0
    %117 = vmatprep.subr.mxu0 0.0
    %118 = vmatpush1.msra.mxu0 0.0
    %119 = vmatprep.subr.mxu0 0.0
    %120 = vmatpush1.msra.mxu0 0.0
    %121 = vmatprep.mubr.f32.mxu0 0.0
    %122 = vmatmul.mubr.f32.gmra.mrb[0].mxu0 %v52
    %v123 = vpop.f32.mrb[0].mxu0
    %v124 = vadd.f32 %v48, %v123
    %v125 = vpop.f32.mrb[0].mxu0
    %126 = vmatprep.mubr.f32.mxu0 0.0
    %127 = vmatmul.mubr.f32.gmra.mrb[0].mxu0 %v55
    %v128 = vpop.f32.mrb[0].mxu0
    %v129 = vadd.f32 %v48, %v128
    %v130 = vpop.f32.mrb[0].mxu0
    %131 = vdwg.mxu0
    %v132 = vmul.f32 %v124, 0.7978846
    %v133 = vmul.f32 %v129, 0.7978846
    %v134 = vmul.f32 %v124, %v124
    %v135 = vmul.f32 %v129, %v129
    %v136 = vmul.f32 %v134, 0.044715
    %v137 = vmul.f32 %v135, 0.044715
    %v138 = vadd.f32 %v136, 1.0
    %v139 = vadd.f32 %v137, 1.0
    %v140 = vmul.f32 %v132, %v138
    %v141 = vmul.f32 %v133, %v139
    %v142 = vmul.f32 %v124, 0.5
    %v143 = vmul.f32 %v129, 0.5
    %v144 = vtanh.pop %v140
    %v145 = vtanh.pop %v141
    %v146 = vadd.f32 %v144, 1.0
    %v147 = vadd.f32 %v145, 1.0
    %v148 = vmul.f32 %v142, %v146
    %v149 = vmul.f32 %v143, %v147
    %v150 = vld [vmem:[%s4] sm:$0x1]
    %v152 = vlaneseq
    %v153 = vshrl.u32 %v152, 7
    %v154 = vsub.s32 0, %v153
    %v155 = vrot.slane %v150, %v154
    %157 = vmatprep.subr.mxu0 0.0
    %158 = vmatpush1.msra.mxu0 %v28
    %159 = vmatprep.subr.mxu0 0.0
    %160 = vmatpush1.msra.mxu0 %v29
    %161 = vmatprep.subr.mxu0 0.0
    %162 = vmatpush1.msra.mxu0 %v30
    %163 = vmatprep.subr.mxu0 0.0
    %164 = vmatpush1.msra.mxu0 %v31
    %165 = vmatprep.subr.mxu0 0.0
    %166 = vmatpush1.msra.mxu0 %v32
    %167 = vmatprep.subr.mxu0 0.0
    %168 = vmatpush1.msra.mxu0 %v33
    %169 = vmatprep.subr.mxu0 0.0
    %170 = vmatpush1.msra.mxu0 %v34
    %171 = vmatprep.subr.mxu0 0.0
    %172 = vmatpush1.msra.mxu0 %v35
    %173 = vmatprep.subr.mxu0 0.0
    %174 = vmatpush1.msra.mxu0 %v36
    %175 = vmatprep.subr.mxu0 0.0
    %176 = vmatpush1.msra.mxu0 %v37
    %177 = vmatprep.subr.mxu0 0.0
    %178 = vmatpush1.msra.mxu0 %v38
    %179 = vmatprep.subr.mxu0 0.0
    %180 = vmatpush1.msra.mxu0 %v39
    %181 = vmatprep.subr.mxu0 0.0
    %182 = vmatpush1.msra.mxu0 %v40
    %183 = vmatprep.subr.mxu0 0.0
    %184 = vmatpush1.msra.mxu0 %v41
    %185 = vmatprep.subr.mxu0 0.0
    %186 = vmatpush1.msra.mxu0 %v42
    %187 = vmatprep.subr.mxu0 0.0
    %188 = vmatpush1.msra.mxu0 %v43
    %189 = vmatprep.subr.mxu0 0.0
    %190 = vmatpush1.msra.mxu0 0.0
    %191 = vmatprep.subr.mxu0 0.0
    %192 = vmatpush1.msra.mxu0 0.0
    %193 = vmatprep.subr.mxu0 0.0
    %194 = vmatpush1.msra.mxu0 0.0
    %195 = vmatprep.subr.mxu0 0.0
    %196 = vmatpush1.msra.mxu0 0.0
    %197 = vmatprep.subr.mxu0 0.0
    %198 = vmatpush1.msra.mxu0 0.0
    %199 = vmatprep.subr.mxu0 0.0
    %200 = vmatpush1.msra.mxu0 0.0
    %201 = vmatprep.subr.mxu0 0.0
    %202 = vmatpush1.msra.mxu0 0.0
    %203 = vmatprep.subr.mxu0 0.0
    %204 = vmatpush1.msra.mxu0 0.0
    %205 = vmatprep.subr.mxu0 0.0
    %206 = vmatpush1.msra.mxu0 0.0
    %207 = vmatprep.subr.mxu0 0.0
    %208 = vmatpush1.msra.mxu0 0.0
    %209 = vmatprep.subr.mxu0 0.0
    %210 = vmatpush1.msra.mxu0 0.0
    %211 = vmatprep.subr.mxu0 0.0
    %212 = vmatpush1.msra.mxu0 0.0
    %213 = vmatprep.subr.mxu0 0.0
    %214 = vmatpush1.msra.mxu0 0.0
    %215 = vmatprep.subr.mxu0 0.0
    %216 = vmatpush1.msra.mxu0 0.0
    %217 = vmatprep.subr.mxu0 0.0
    %218 = vmatpush1.msra.mxu0 0.0
    %219 = vmatprep.subr.mxu0 0.0
    %220 = vmatpush1.msra.mxu0 0.0
    %221 = vmatprep.mubr.f32.mxu0 0.0
    %222 = vmatmul.mubr.f32.gmra.mrb[0].mxu0 %v148
    %v223 = vpop.f32.mrb[0].mxu0
    %v224 = vadd.f32 %v155, %v223
    %v225 = vpop.f32.mrb[0].mxu0
    %226 = vmatprep.mubr.f32.mxu0 0.0
    %227 = vmatmul.mubr.f32.gmra.mrb[0].mxu0 %v149
    %v228 = vpop.f32.mrb[0].mxu0
    %v229 = vadd.f32 %v155, %v228
    %v230 = vpop.f32.mrb[0].mxu0
    %231 = vdwg.mxu0
    %232 = vst.msk [vmem:[#allocation2] sm:$0xff] %vm50, %v224
    %233 = vst.msk [vmem:[#allocation2 + $0x8] sm:$0xff] %vm50, %v229
    // Predicated region
    $region22: #{tpu_custom_call.1} parent=1 // pred_check
      _
    $region23: #{tpu_custom_call.1} parent=1 // pred_check_branch
      %235 = sbr.rel (0) target = $region25
    $region24: #{tpu_custom_call.1} parent=1 // pred_region
      %s237 = ssub.s32 256, 256
      %238 = vsyncadd [#allocation3], %s237
      %s239 = sshll.u32 [#allocation2], 4
      %s240 = int_to_ptr.vmem [resolvable:$true] %s239
      %245 = dma.vmem_to_hbm [thread:$0]  %s240, 256, %s5, [#allocation3], 128, 128, 8
    $region25: #{tpu_custom_call.1} parent=1 // pred_fallthru
      _
    // Predicated region
    $region26: #{tpu_custom_call.1} parent=1 // pred_check
      _
    $region27: #{tpu_custom_call.1} parent=1 // pred_check_branch
      %247 = sbr.rel (0) target = $region29
    $region28: #{tpu_custom_call.1} parent=1 // pred_region
      %248 = dma.done [#allocation3], 256
    $region29: #{tpu_custom_call.1} parent=1 // pred_fallthru
      _
    %249 = vsyncpa [#allocation3], 1

</llo_original>
